<compile_context>
chip_gen: v5e
topology: v5e:2x2
jax: 0.10.0
libtpu: 0.0.40
codegen_flags: <defaults>
</compile_context>

<pallas_src>
import functools

import jax
import jax.numpy as jnp
from jax.experimental import pallas as pl
from jax.experimental.pallas import tpu as pltpu


# ----------------------------------------------------------------------------
# Generation-aware VMEM budget
# ----------------------------------------------------------------------------
def _vmem_usable_bytes():
    cap = 0
    try:
        cap = int(getattr(pltpu.get_tpu_info(), "vmem_capacity_bytes"))
    except Exception:
        cap = 0
    if cap <= 0:
        cap = 64 * 1024 * 1024          # conservative default (v7x per-TC size)
    return (cap * 3) // 4               # headroom for Mosaic internal scratch


# ----------------------------------------------------------------------------
# Kernel 1: modulation
#   y = SiLU(emb) @ W^T + b, chunked into (scale_msa, gate_msa, scale_mlp,
#   gate_mlp); chunk 0 is emitted pre-folded with the RMSNorm weight:
#   combined = norm_w * (1 + scale_msa).
# ----------------------------------------------------------------------------
def mod_kernel(h_ref, w_ref, b_ref, nw_ref,
               comb_ref, gmsa_ref, smlp_ref, gmlp_ref):
    # h_ref:  (B, Din)          resident SiLU(emb) in the matmul dtype
    # w_ref:  (4*TILE_N, Din)   streamed weight slab (rows: msa|gmsa|smlp|gmlp)
    # b_ref:  (1, 4*TILE_N)
    # nw_ref: (1, TILE_N)       RMSNorm elementwise weight block
    # outputs: (B, TILE_N) each
    tile_n = nw_ref.shape[1]
    y = jax.lax.dot_general(                       # single MXU matmul per step
        h_ref[...], w_ref[...],
        dimension_numbers=(((1,), (1,)), ((), ())),
        preferred_element_type=jnp.float32)        # (B, 4*TILE_N), f32 acc
    y = y + b_ref[...].astype(jnp.float32)
    smsa = y[:, 0 * tile_n:1 * tile_n]             # aligned lane slices
    comb = nw_ref[...].astype(jnp.float32) * (1.0 + smsa)
    comb_ref[...] = comb.astype(comb_ref.dtype)
    gmsa_ref[...] = y[:, 1 * tile_n:2 * tile_n].astype(gmsa_ref.dtype)
    smlp_ref[...] = y[:, 2 * tile_n:3 * tile_n].astype(smlp_ref.dtype)
    gmlp_ref[...] = y[:, 3 * tile_n:4 * tile_n].astype(gmlp_ref.dtype)


# ----------------------------------------------------------------------------
# Kernel 2: y = RMSNorm(x) * combined      (combined already folds norm_w)
# ----------------------------------------------------------------------------
def rmsnorm_kernel(x_ref, comb_ref, out_ref, *, eps, compute_f32):
    # x_ref: (1, TILE_S, D), comb_ref: (1, 1, D)
    x = x_ref[...]
    xf = x.astype(jnp.float32)
    var = jnp.mean(xf * xf, axis=-1, keepdims=True)       # f32 accumulation
    inv = jax.lax.rsqrt(var + eps)
    if compute_f32:
        out = (xf * inv) * comb_ref[...].astype(jnp.float32)
    else:
        # bf16 VALU path (v6e/v7x): keep the large elementwise temps in x.dtype
        # to halve in-kernel VMEM/vreg pressure.
        out = (x * inv.astype(x.dtype)) * comb_ref[...].astype(x.dtype)
    out_ref[...] = out.astype(out_ref.dtype)


# ----------------------------------------------------------------------------
# Tile choosers (budget comes from the chip's VMEM capacity)
# ----------------------------------------------------------------------------
def _choose_tile_s(S, D, x_itemsize, budget_bytes, prefer_split):
    sub = 8 if x_itemsize >= 4 else 16            # bf16 packs 16 rows / vreg
    s_pad = ((S + sub - 1) // sub) * sub
    per_row = D * (4 * x_itemsize + 8)            # 2x in + 2x out blocks + f32 temps
    cap = max(sub, min(budget_bytes // per_row, s_pad))
    if prefer_split and s_pad > sub:              # keep >=2 grid steps (v7x: 2 TCs)
        cap = min(cap, max(sub, ((s_pad // 2 + sub - 1) // sub) * sub))
    ladder = [t for t in (2048, 1024, 512, 256, 128, 64, 32, 16, 8)
              if sub <= t <= cap]
    if not ladder:
        return sub
    best = ladder[0]
    for t in ladder:                              # prefer an exact divisor near the max
        if S % t == 0 and 2 * t >= best:
            return t
    return best                                   # cdiv grid + masked tail block


def _choose_tile_n(D, Din, B, w_itemsize, out_itemsize, budget_bytes):
    def fits(t):
        per_step = (2 * 4 * t * Din * w_itemsize      # double-buffered weight slab
                    + 2 * 4 * B * t * out_itemsize    # double-buffered outputs
                    + 4 * B * t * 4                   # f32 matmul result
                    + 16 * t)                         # bias + norm_w blocks
        return per_step <= budget_bytes
    cands = [t for t in (1024, 512, 256, 128) if D % t == 0 and fits(t)]
    if not cands:
        return 128
    multi = [t for t in cands if D // t >= 2]         # >=2 steps for v7x's 2 TCs
    return multi[0] if multi else cands[0]


# ----------------------------------------------------------------------------
# Wrapper
# ----------------------------------------------------------------------------
def lumina_rmsnorm_zero(x, emb, lin_w, lin_b, norm_w, *, eps=1e-5,
                        tile_s=None, tile_n=None, mod_weight_dtype=None):
    """Pallas implementation of LuminaRMSNormZero.forward.

    x:      (B, S, D)
    emb:    (B, Din) with Din = min(D, 1024)
    lin_w:  (4*D, Din)   (PyTorch nn.Linear weight layout)
    lin_b:  (4*D,)
    norm_w: (D,)         (RMSNorm elementwise-affine weight)

    Returns (x_out, gate_msa, scale_mlp, gate_mlp).
    """
    B, S, D = x.shape
    Din = emb.shape[-1]
    assert lin_w.shape == (4 * D, Din) and lin_b.shape == (4 * D,)
    # TODO(synk): pad the lane dim for embedding dims that are not multiples of 128.
    assert D % 128 == 0, "embedding_dim must be a multiple of 128"

    out_dtype = x.dtype
    x_item = jnp.dtype(x.dtype).itemsize
    out_item = jnp.dtype(out_dtype).itemsize
    usable = _vmem_usable_bytes()

    # Weight-stream precision: the dominant HBM lever for the modulation kernel.
    if mod_weight_dtype is None:
        mod_weight_dtype = jnp.bfloat16 if x.dtype == jnp.bfloat16 else lin_w.dtype
    compute_dtype = jnp.dtype(mod_weight_dtype)
    w_item = compute_dtype.itemsize

    if tile_n is None:
        tile_n = _choose_tile_n(D, Din, B, w_item, out_item, usable)
    if tile_s is None:
        tile_s = _choose_tile_s(S, D, x_item, usable, prefer_split=(B == 1))
    assert D % tile_n == 0
    nblk = D // tile_n

    # SiLU hoisted out of the per-step kernel body (tiny (B, Din) op, runs once).
    ef = emb.astype(jnp.float32)
    h = (ef * jax.nn.sigmoid(ef)).astype(compute_dtype)

    # One-time weight prep (at model-load time in a real deployment): reorder
    # rows so each grid step reads ONE contiguous (4*tile_n, Din) slab holding
    # the 4 chunks' rows for that output block; cast to the stream dtype.
    w_perm = (lin_w.reshape(4, nblk, tile_n, Din)
                   .transpose(1, 0, 2, 3)
                   .reshape(4 * D, Din)
                   .astype(compute_dtype))
    b_perm = (lin_b.reshape(4, nblk, tile_n)
                   .transpose(1, 0, 2)
                   .reshape(1, 4 * D))
    nw2 = norm_w.reshape(1, D)

    # ---- kernel 1: modulation (HBM-bound on the weight stream) ----
    mod_cost = pl.CostEstimate(
        flops=2 * B * 4 * D * Din,
        transcendentals=0,
        bytes_accessed=int(4 * D * Din * w_item + 4 * D * lin_b.dtype.itemsize
                           + B * Din * w_item + D * norm_w.dtype.itemsize
                           + 4 * B * D * out_item),
    )
    combined, gate_msa, scale_mlp, gate_mlp = pl.pallas_call(
        mod_kernel,
        out_shape=tuple(jax.ShapeDtypeStruct((B, D), out_dtype) for _ in range(4)),
        grid=(nblk,),
        in_specs=[
            pl.BlockSpec((B, Din), lambda n: (0, 0)),           # h: resident
            pl.BlockSpec((4 * tile_n, Din), lambda n: (n, 0)),  # weight: streamed
            pl.BlockSpec((1, 4 * tile_n), lambda n: (0, n)),    # bias
            pl.BlockSpec((1, tile_n), lambda n: (0, n)),        # norm_w
        ],
        out_specs=tuple(pl.BlockSpec((B, tile_n), lambda n: (0, n))
                        for _ in range(4)),
        compiler_params=pltpu.CompilerParams(
            dimension_semantics=("parallel",),
            vmem_limit_bytes=usable),
        cost_estimate=mod_cost,
    )(h, w_perm, b_perm, nw2)

    # ---- kernel 2: RMSNorm(x) * combined, tiled over (B, S) ----
    rms_cost = pl.CostEstimate(
        flops=4 * B * S * D,
        transcendentals=B * S,
        bytes_accessed=int(2 * B * S * D * x_item + B * D * out_item),
    )
    x_out = pl.pallas_call(
        functools.partial(rmsnorm_kernel, eps=eps,
                          compute_f32=(x.dtype == jnp.float32)),
        out_shape=jax.ShapeDtypeStruct((B, S, D), out_dtype),
        grid=(B, pl.cdiv(S, tile_s)),
        in_specs=[
            pl.BlockSpec((1, tile_s, D), lambda b, s: (b, s, 0)),   # x tile
            pl.BlockSpec((1, 1, D), lambda b, s: (b, 0, 0)),        # combined(b)
        ],
        out_specs=pl.BlockSpec((1, tile_s, D), lambda b, s: (b, s, 0)),
        compiler_params=pltpu.CompilerParams(
            dimension_semantics=("parallel", "parallel"),
            vmem_limit_bytes=usable),
        cost_estimate=rms_cost,
    )(x, combined.reshape(B, 1, D))

    return x_out, gate_msa, scale_mlp, gate_mlp


# ----------------------------------------------------------------------------
# Pure-JAX reference for verification
# ----------------------------------------------------------------------------
def lumina_rmsnorm_zero_ref(x, emb, lin_w, lin_b, norm_w, *, eps=1e-5):
    h = emb * jax.nn.sigmoid(emb)
    mod = h @ lin_w.T + lin_b
    D = x.shape[-1]
    scale_msa, gate_msa, scale_mlp, gate_mlp = (
        mod[:, 0:D], mod[:, D:2 * D], mod[:, 2 * D:3 * D], mod[:, 3 * D:4 * D])
    var = jnp.mean(x * x, axis=-1, keepdims=True)
    xn = x * jax.lax.rsqrt(var + eps) * norm_w
    x_out = xn * (1.0 + scale_msa[:, None, :])
    return x_out, gate_msa, scale_mlp, gate_mlp


if __name__ == "__main__":
    # Small shapes consistent with the module: D a multiple of 128 (lane-dense),
    # S chosen so the rmsnorm grid (B, S//tile_s) actually tiles.
    B, S, D = 2, 64, 256
    Din = min(D, 1024)

    key = jax.random.PRNGKey(0)
    k_x, k_e, k_w, k_b, k_n = jax.random.split(key, 5)

    x = jax.random.normal(k_x, (B, S, D), dtype=jnp.float32)
    emb = jax.random.normal(k_e, (B, Din), dtype=jnp.float32)

    # Deterministic synthetic parameters (no checkpoint loading).
    lin_w = 0.02 * jax.random.normal(k_w, (4 * D, Din), dtype=jnp.float32)
    lin_b = 0.01 * jax.random.normal(k_b, (4 * D,), dtype=jnp.float32)
    norm_w = 1.0 + 0.05 * jax.random.normal(k_n, (D,), dtype=jnp.float32)

    refs = lumina_rmsnorm_zero_ref(x, emb, lin_w, lin_b, norm_w, eps=1e-5)

    # f32 weight path (tight tolerance); tile_s=16 so the rms grid tiles.
    outs = jax.block_until_ready(
        lumina_rmsnorm_zero(x, emb, lin_w, lin_b, norm_w, eps=1e-5, tile_s=16))
    for o, r in zip(outs, refs):
        assert o.shape == r.shape and o.dtype == r.dtype
        assert jnp.allclose(o, r, atol=1e-4, rtol=1e-4), float(jnp.max(jnp.abs(o - r)))

    # bf16 weight-streaming path (the main HBM-bandwidth lever): loose tolerance.
    outs_bf = jax.block_until_ready(
        lumina_rmsnorm_zero(x, emb, lin_w, lin_b, norm_w, eps=1e-5,
                            mod_weight_dtype=jnp.bfloat16))
    for o, r in zip(outs_bf, refs):
        assert o.shape == r.shape
        assert jnp.allclose(o, r, atol=5e-2, rtol=5e-2), float(jnp.max(jnp.abs(o - r)))

    print("KERNEL_OK")
</pallas_src>

<mosaic_0001>
module attributes {stable_mosaic.version = 11 : i64} {
  func.func @mod_kernel(%arg0: i32, %arg1: memref<2x256xf32, #tpu.memory_space<vmem>>, %arg2: memref<512x256xf32, #tpu.memory_space<vmem>>, %arg3: memref<1x512xf32, #tpu.memory_space<vmem>>, %arg4: memref<1x128xf32, #tpu.memory_space<vmem>>, %arg5: memref<2x128xf32, #tpu.memory_space<vmem>>, %arg6: memref<2x128xf32, #tpu.memory_space<vmem>>, %arg7: memref<2x128xf32, #tpu.memory_space<vmem>>, %arg8: memref<2x128xf32, #tpu.memory_space<vmem>>) attributes {dimension_semantics = [#tpu.dimension_semantics<parallel>], iteration_bounds = array<i64: 2>, scalar_prefetch = 0 : i64, scratch_operands = 0 : i64, tpu.core_type = #tpu.core_type<tc>, window_params = [{pipeline_mode = #tpu.pipeline_mode<synchronous>, transform_indices = @transform_0, window_bounds = array<i64: 2, 256>}, {transform_indices = @transform_1, window_bounds = array<i64: 512, 256>}, {transform_indices = @transform_2, window_bounds = array<i64: 1, 512>}, {transform_indices = @transform_3, window_bounds = array<i64: 1, 128>}, {transform_indices = @transform_4, window_bounds = array<i64: 2, 128>}, {transform_indices = @transform_5, window_bounds = array<i64: 2, 128>}, {transform_indices = @transform_6, window_bounds = array<i64: 2, 128>}, {transform_indices = @transform_7, window_bounds = array<i64: 2, 128>}]} {
    %c0 = arith.constant 0 : index
    %c0_0 = arith.constant 0 : index
    %0 = vector.load %arg1[%c0, %c0_0] : memref<2x256xf32, #tpu.memory_space<vmem>>, vector<2x256xf32>
    %c0_1 = arith.constant 0 : index
    %c0_2 = arith.constant 0 : index
    %1 = vector.load %arg2[%c0_1, %c0_2] : memref<512x256xf32, #tpu.memory_space<vmem>>, vector<512x256xf32>
    %cst = arith.constant dense<0.000000e+00> : vector<2x512xf32>
    %2 = tpu.matmul %0, %1, %cst {dimension_numbers = #tpu.dot_dimension_numbers<[1], [1], [0], [0], [0, 0, 1, 0], [], []>} : vector<2x256xf32>, vector<512x256xf32>, vector<2x512xf32> -> vector<2x512xf32>
    %c0_3 = arith.constant 0 : index
    %c0_4 = arith.constant 0 : index
    %3 = vector.load %arg3[%c0_3, %c0_4] : memref<1x512xf32, #tpu.memory_space<vmem>>, vector<1x512xf32>
    %4 = vector.broadcast %3 : vector<1x512xf32> to vector<2x512xf32>
    %5 = arith.addf %2, %4 : vector<2x512xf32>
    %6 = vector.extract_strided_slice %5 {offsets = [0, 0], sizes = [2, 128], strides = [1, 1]} : vector<2x512xf32> to vector<2x128xf32>
    %c0_5 = arith.constant 0 : index
    %c0_6 = arith.constant 0 : index
    %7 = vector.load %arg4[%c0_5, %c0_6] : memref<1x128xf32, #tpu.memory_space<vmem>>, vector<1x128xf32>
    %cst_7 = arith.constant 1.000000e+00 : f32
    %8 = vector.broadcast %cst_7 : f32 to vector<2x128xf32>
    %9 = arith.addf %8, %6 : vector<2x128xf32>
    %10 = vector.broadcast %7 : vector<1x128xf32> to vector<2x128xf32>
    %11 = arith.mulf %10, %9 : vector<2x128xf32>
    %c0_8 = arith.constant 0 : index
    %c0_9 = arith.constant 0 : index
    %12 = vector.load %arg5[%c0_8, %c0_9] : memref<2x128xf32, #tpu.memory_space<vmem>>, vector<2x128xf32>
    tpu.vector_store %arg5[%c0_8, %c0_9], %11 {strides = array<i32>} : memref<2x128xf32, #tpu.memory_space<vmem>>, vector<2x128xf32>,
    %13 = vector.extract_strided_slice %5 {offsets = [0, 128], sizes = [2, 128], strides = [1, 1]} : vector<2x512xf32> to vector<2x128xf32>
    %c0_10 = arith.constant 0 : index
    %c0_11 = arith.constant 0 : index
    %14 = vector.load %arg6[%c0_10, %c0_11] : memref<2x128xf32, #tpu.memory_space<vmem>>, vector<2x128xf32>
    tpu.vector_store %arg6[%c0_10, %c0_11], %13 {strides = array<i32>} : memref<2x128xf32, #tpu.memory_space<vmem>>, vector<2x128xf32>,
    %15 = vector.extract_strided_slice %5 {offsets = [0, 256], sizes = [2, 128], strides = [1, 1]} : vector<2x512xf32> to vector<2x128xf32>
    %c0_12 = arith.constant 0 : index
    %c0_13 = arith.constant 0 : index
    %16 = vector.load %arg7[%c0_12, %c0_13] : memref<2x128xf32, #tpu.memory_space<vmem>>, vector<2x128xf32>
    tpu.vector_store %arg7[%c0_12, %c0_13], %15 {strides = array<i32>} : memref<2x128xf32, #tpu.memory_space<vmem>>, vector<2x128xf32>,
    %17 = vector.extract_strided_slice %5 {offsets = [0, 384], sizes = [2, 128], strides = [1, 1]} : vector<2x512xf32> to vector<2x128xf32>
    %c0_14 = arith.constant 0 : index
    %c0_15 = arith.constant 0 : index
    %18 = vector.load %arg8[%c0_14, %c0_15] : memref<2x128xf32, #tpu.memory_space<vmem>>, vector<2x128xf32>
    tpu.vector_store %arg8[%c0_14, %c0_15], %17 {strides = array<i32>} : memref<2x128xf32, #tpu.memory_space<vmem>>, vector<2x128xf32>,
    return
  }
  func.func @transform_0(%arg0: i32) -> (i32, i32) {
    %c0_i32 = arith.constant 0 : i32
    %c0_i32_0 = arith.constant 0 : i32
    %c0_i32_1 = arith.constant 0 : i32
    return %c0_i32, %c0_i32_0 : i32, i32
  }
  func.func @transform_1(%arg0: i32) -> (i32, i32) {
    %c0_i32 = arith.constant 0 : i32
    %c0_i32_0 = arith.constant 0 : i32
    return %arg0, %c0_i32 : i32, i32
  }
  func.func @transform_2(%arg0: i32) -> (i32, i32) {
    %c0_i32 = arith.constant 0 : i32
    %c0_i32_0 = arith.constant 0 : i32
    return %c0_i32, %arg0 : i32, i32
  }
  func.func @transform_3(%arg0: i32) -> (i32, i32) {
    %c0_i32 = arith.constant 0 : i32
    %c0_i32_0 = arith.constant 0 : i32
    return %c0_i32, %arg0 : i32, i32
  }
  func.func @transform_4(%arg0: i32) -> (i32, i32) {
    %c0_i32 = arith.constant 0 : i32
    %c0_i32_0 = arith.constant 0 : i32
    return %c0_i32, %arg0 : i32, i32
  }
  func.func @transform_5(%arg0: i32) -> (i32, i32) {
    %c0_i32 = arith.constant 0 : i32
    %c0_i32_0 = arith.constant 0 : i32
    return %c0_i32, %arg0 : i32, i32
  }
  func.func @transform_6(%arg0: i32) -> (i32, i32) {
    %c0_i32 = arith.constant 0 : i32
    %c0_i32_0 = arith.constant 0 : i32
    return %c0_i32, %arg0 : i32, i32
  }
  func.func @transform_7(%arg0: i32) -> (i32, i32) {
    %c0_i32 = arith.constant 0 : i32
    %c0_i32_0 = arith.constant 0 : i32
    return %c0_i32, %arg0 : i32, i32
  }
}

</mosaic_0001>

<llo_original>
// kernel: tpu_custom_call.1
$region0: #{tpu_custom_call.1}
  #allocation0 [shape = 'u32[]', space=smem, size = 0x4, offset = 0x4, fixed_abs, tag = 'smem constant byte address 0x4 - core index']
  #allocation1 [shape = 'u32[72,128]{1,0:T(1,128)}', space=vmem, size = 0x9000, scoped, tag = 'internal scratch']
  %s0 = inlined_call_operand.hbm [shape: f32[2,256], index: 0, kind: input, shape index: {}]
  %s1 = inlined_call_operand.hbm [shape: f32[1024,256], index: 1, kind: input, shape index: {}]
  %s2 = inlined_call_operand.hbm [shape: f32[1,1024], index: 2, kind: input, shape index: {}]
  %s3 = inlined_call_operand.vmem [shape: f32[1,256], index: 3, kind: input, shape index: {}]
  %s4 = inlined_call_operand.hbm [shape: f32[2,256], index: 4, kind: output, shape index: {0}]
  %s5 = inlined_call_operand.hbm [shape: f32[2,256], index: 5, kind: output, shape index: {1}]
  %s6 = inlined_call_operand.hbm [shape: f32[2,256], index: 6, kind: output, shape index: {2}]
  %s7 = inlined_call_operand.hbm [shape: f32[2,256], index: 7, kind: output, shape index: {3}]
  %8 = xla_tuple %s4, %s5, %s6, %s7
  %s9 = sld [smem:[#allocation0]]
  $region85: #{tpu_custom_call.1} parent=0
    _
  %s11 = ssub.s32 1, %s9
  %s12 = scalar_select 0, %s11, %s9
  $region1: #{tpu_custom_call.1} parent=0
    #allocation2 [shape = 'u8[2048]{0}', space=vmem, size = 0x800, scoped, tag = 'input window, operand 0, single buffered']
    #allocation3 [shape = 's32[2]{0}', space=sflag, size = 0x8, scoped, tag = 'scoped memory for tpu_custom_call.1']
    #allocation4 [shape = 's32[2]{0}', space=sflag, size = 0x8, scoped, tag = 'scoped memory for tpu_custom_call.1']
    #allocation5 [shape = 'u8[1048576]{0}', space=vmem, size = 0x100000, scoped, tag = 'input window, operand 1']
    #allocation6 [shape = 's32[2]{0}', space=sflag, size = 0x8, scoped, tag = 'scoped memory for tpu_custom_call.1']
    #allocation7 [shape = 'u8[4096]{0}', space=vmem, size = 0x1000, scoped, tag = 'input window, operand 2']
    #allocation8 [shape = 'u8[2048]{0}', space=vmem, size = 0x800, scoped, tag = 'output window, operand 0']
    #allocation9 [shape = 'u8[2048]{0}', space=vmem, size = 0x800, scoped, tag = 'output window, operand 1']
    #allocation10 [shape = 's32[2]{0}', space=sflag, size = 0x8, scoped, tag = 'scoped memory for tpu_custom_call.1']
    #allocation11 [shape = 'u8[2048]{0}', space=vmem, size = 0x800, scoped, tag = 'output window, operand 2']
    #allocation12 [shape = 'u8[2048]{0}', space=vmem, size = 0x800, scoped, tag = 'output window, operand 3']
    #allocation13 [shape = 's32[2]{0}', space=sflag, size = 0x8, scoped, tag = 'scoped memory for tpu_custom_call.1']
    %13 = vsyncpa [#allocation3], 0
    %14 = vsyncpa [#allocation6], 0
    %s15 = scalar_lea.sflag [#allocation6], 1
    %16 = vsyncpa %s15, 0
    %17 = vsyncpa [#allocation4], 0
    %s18 = scalar_lea.sflag [#allocation4], 1
    %19 = vsyncpa %s18, 0
    %20 = vsyncpa [#allocation10], 0
    %s21 = scalar_lea.sflag [#allocation10], 1
    %22 = vsyncpa %s21, 0
    %23 = vsyncpa [#allocation13], 0
    %s24 = scalar_lea.sflag [#allocation13], 1
    %25 = vsyncpa %s24, 0
    loop: start=0, step=1, limit=4
    $region2: #{tpu_custom_call.1} parent=1 // loop_pre_header
      _
    $region3: #{tpu_custom_call.1} parent=1 // loop_header
      %s27 = sphi 0, %s31
      %p28 = scmp.ge.s32.totalorder %s27, 4
      %s35 = sphi 0, %s35
      %s37 = sphi 0, %s35
      %s38 = sphi 0, %s37
      %s52 = sphi 0, %s38
      %s58 = sphi 0, %s60
      %s61 = sphi 0, %s58
      %s62 = sphi 0, %s61
      %s78 = sphi 0, %s62
      %s84 = sphi 0, %s86
      %s87 = sphi 0, %s84
      %s88 = sphi 0, %s87
      %s104 = sphi 0, %s88
      %s110 = sphi 0, %s112
      %s113 = sphi 0, %s110
      %s114 = sphi 0, %s113
      %s130 = sphi 0, %s114
      %s136 = sphi 0, %s138
      %s139 = sphi 0, %s136
      %s140 = sphi 0, %s139
      %s156 = sphi 0, %s140
      %s162 = sphi 0, %s164
      %s165 = sphi 0, %s162
      %s166 = sphi 0, %s165
      %s182 = sphi 0, %s166
      %s188 = sphi 0, %s190
      %s191 = sphi 0, %s188
      %s192 = sphi 0, %s191
      %s208 = sphi 0, %s192
      %s214 = sphi 0, %s216
      %s217 = sphi 0, %s214
      %s218 = sphi 0, %s217
      %s234 = sphi 0, %s218
    $region4: #{tpu_custom_call.1} parent=1 // loop_header_branch
      %30 = sbr.rel (%p28) target = $region8
    $region5: #{tpu_custom_call.1} parent=1 // loop_body
      %s32 = ssub.s32 %s27, 1
      %s33 = ssub.s32 %s27, 2
      %s34 = sadd.s32 %s27, 1
      %s36 = sadd.s32 %s35, 1
      %p39 = scmp.eq.s32.totalorder %s27, 1
      %p40 = scmp.ne.s32.totalorder %s35, %s37
      %p41 = scmp.eq.s32.totalorder %s27, 0
      %p42 = por %p40, %p41
      %p43 = scmp.ne.s32.totalorder %s35, %s37
      %p44 = scmp.eq.s32.totalorder %s32, 1
      %p45 = por %p43, %p44
      %p46 = scmp.ne.s32.totalorder %s37, %s38
      %p47 = scmp.eq.s32.totalorder %s32, 0
      %p48 = por %p46, %p47
      %p49 = scmp.ne.s32.totalorder %s37, %s38
      %p50 = scmp.eq.s32.totalorder %s33, 1
      %p51 = por %p49, %p50
      %p53 = scmp.ne.s32.totalorder %s38, %s52
      %p54 = scmp.eq.s32.totalorder %s33, 0
      %p55 = por %p53, %p54
      %s56 = ssub.s32 %s27, %s34
      %p57 = scmp.eq.s32.totalorder %s56, 0
      %s59 = sadd.s32 %s58, 1
      %s60 = scalar_select %p57, %s58, %s59
      %p63 = pneg %p57
      %p64 = scmp.eq.s32.totalorder %s27, 1
      %p65 = por %p63, %p64
      %p66 = scmp.ne.s32.totalorder %s58, %s61
      %p67 = scmp.eq.s32.totalorder %s27, 0
      %p68 = por %p66, %p67
      %p69 = scmp.ne.s32.totalorder %s58, %s61
      %p70 = scmp.eq.s32.totalorder %s32, 1
      %p71 = por %p69, %p70
      %p72 = scmp.ne.s32.totalorder %s61, %s62
      %p73 = scmp.eq.s32.totalorder %s32, 0
      %p74 = por %p72, %p73
      %p75 = scmp.ne.s32.totalorder %s61, %s62
      %p76 = scmp.eq.s32.totalorder %s33, 1
      %p77 = por %p75, %p76
      %p79 = scmp.ne.s32.totalorder %s62, %s78
      %p80 = scmp.eq.s32.totalorder %s33, 0
      %p81 = por %p79, %p80
      %s82 = ssub.s32 %s27, %s34
      %p83 = scmp.eq.s32.totalorder %s82, 0
      %s85 = sadd.s32 %s84, 1
      %s86 = scalar_select %p83, %s84, %s85
      %p89 = pneg %p83
      %p90 = scmp.eq.s32.totalorder %s27, 1
      %p91 = por %p89, %p90
      %p92 = scmp.ne.s32.totalorder %s84, %s87
      %p93 = scmp.eq.s32.totalorder %s27, 0
      %p94 = por %p92, %p93
      %p95 = scmp.ne.s32.totalorder %s84, %s87
      %p96 = scmp.eq.s32.totalorder %s32, 1
      %p97 = por %p95, %p96
      %p98 = scmp.ne.s32.totalorder %s87, %s88
      %p99 = scmp.eq.s32.totalorder %s32, 0
      %p100 = por %p98, %p99
      %p101 = scmp.ne.s32.totalorder %s87, %s88
      %p102 = scmp.eq.s32.totalorder %s33, 1
      %p103 = por %p101, %p102
      %p105 = scmp.ne.s32.totalorder %s88, %s104
      %p106 = scmp.eq.s32.totalorder %s33, 0
      %p107 = por %p105, %p106
      %s108 = ssub.s32 %s27, %s34
      %p109 = scmp.eq.s32.totalorder %s108, 0
      %s111 = sadd.s32 %s110, 1
      %s112 = scalar_select %p109, %s110, %s111
      %p115 = pneg %p109
      %p116 = scmp.eq.s32.totalorder %s27, 1
      %p117 = por %p115, %p116
      %p118 = scmp.ne.s32.totalorder %s110, %s113
      %p119 = scmp.eq.s32.totalorder %s27, 0
      %p120 = por %p118, %p119
      %p121 = scmp.ne.s32.totalorder %s110, %s113
      %p122 = scmp.eq.s32.totalorder %s32, 1
      %p123 = por %p121, %p122
      %p124 = scmp.ne.s32.totalorder %s113, %s114
      %p125 = scmp.eq.s32.totalorder %s32, 0
      %p126 = por %p124, %p125
      %p127 = scmp.ne.s32.totalorder %s113, %s114
      %p128 = scmp.eq.s32.totalorder %s33, 1
      %p129 = por %p127, %p128
      %p131 = scmp.ne.s32.totalorder %s114, %s130
      %p132 = scmp.eq.s32.totalorder %s33, 0
      %p133 = por %p131, %p132
      %s134 = ssub.s32 %s27, %s34
      %p135 = scmp.eq.s32.totalorder %s134, 0
      %s137 = sadd.s32 %s136, 1
      %s138 = scalar_select %p135, %s136, %s137
      %p141 = pneg %p135
      %p142 = scmp.eq.s32.totalorder %s27, 1
      %p143 = por %p141, %p142
      %p144 = scmp.ne.s32.totalorder %s136, %s139
      %p145 = scmp.eq.s32.totalorder %s27, 0
      %p146 = por %p144, %p145
      %p147 = scmp.ne.s32.totalorder %s136, %s139
      %p148 = scmp.eq.s32.totalorder %s32, 1
      %p149 = por %p147, %p148
      %p150 = scmp.ne.s32.totalorder %s139, %s140
      %p151 = scmp.eq.s32.totalorder %s32, 0
      %p152 = por %p150, %p151
      %p153 = scmp.ne.s32.totalorder %s139, %s140
      %p154 = scmp.eq.s32.totalorder %s33, 1
      %p155 = por %p153, %p154
      %p157 = scmp.ne.s32.totalorder %s140, %s156
      %p158 = scmp.eq.s32.totalorder %s33, 0
      %p159 = por %p157, %p158
      %s160 = ssub.s32 %s27, %s34
      %p161 = scmp.eq.s32.totalorder %s160, 0
      %s163 = sadd.s32 %s162, 1
      %s164 = scalar_select %p161, %s162, %s163
      %p167 = pneg %p161
      %p168 = scmp.eq.s32.totalorder %s27, 1
      %p169 = por %p167, %p168
      %p170 = scmp.ne.s32.totalorder %s162, %s165
      %p171 = scmp.eq.s32.totalorder %s27, 0
      %p172 = por %p170, %p171
      %p173 = scmp.ne.s32.totalorder %s162, %s165
      %p174 = scmp.eq.s32.totalorder %s32, 1
      %p175 = por %p173, %p174
      %p176 = scmp.ne.s32.totalorder %s165, %s166
      %p177 = scmp.eq.s32.totalorder %s32, 0
      %p178 = por %p176, %p177
      %p179 = scmp.ne.s32.totalorder %s165, %s166
      %p180 = scmp.eq.s32.totalorder %s33, 1
      %p181 = por %p179, %p180
      %p183 = scmp.ne.s32.totalorder %s166, %s182
      %p184 = scmp.eq.s32.totalorder %s33, 0
      %p185 = por %p183, %p184
      %s186 = ssub.s32 %s27, %s34
      %p187 = scmp.eq.s32.totalorder %s186, 0
      %s189 = sadd.s32 %s188, 1
      %s190 = scalar_select %p187, %s188, %s189
      %p193 = pneg %p187
      %p194 = scmp.eq.s32.totalorder %s27, 1
      %p195 = por %p193, %p194
      %p196 = scmp.ne.s32.totalorder %s188, %s191
      %p197 = scmp.eq.s32.totalorder %s27, 0
      %p198 = por %p196, %p197
      %p199 = scmp.ne.s32.totalorder %s188, %s191
      %p200 = scmp.eq.s32.totalorder %s32, 1
      %p201 = por %p199, %p200
      %p202 = scmp.ne.s32.totalorder %s191, %s192
      %p203 = scmp.eq.s32.totalorder %s32, 0
      %p204 = por %p202, %p203
      %p205 = scmp.ne.s32.totalorder %s191, %s192
      %p206 = scmp.eq.s32.totalorder %s33, 1
      %p207 = por %p205, %p206
      %p209 = scmp.ne.s32.totalorder %s192, %s208
      %p210 = scmp.eq.s32.totalorder %s33, 0
      %p211 = por %p209, %p210
      %s212 = ssub.s32 %s27, %s34
      %p213 = scmp.eq.s32.totalorder %s212, 0
      %s215 = sadd.s32 %s214, 1
      %s216 = scalar_select %p213, %s214, %s215
      %p219 = pneg %p213
      %p220 = scmp.eq.s32.totalorder %s27, 1
      %p221 = por %p219, %p220
      %p222 = scmp.ne.s32.totalorder %s214, %s217
      %p223 = scmp.eq.s32.totalorder %s27, 0
      %p224 = por %p222, %p223
      %p225 = scmp.ne.s32.totalorder %s214, %s217
      %p226 = scmp.eq.s32.totalorder %s32, 1
      %p227 = por %p225, %p226
      %p228 = scmp.ne.s32.totalorder %s217, %s218
      %p229 = scmp.eq.s32.totalorder %s32, 0
      %p230 = por %p228, %p229
      %p231 = scmp.ne.s32.totalorder %s217, %s218
      %p232 = scmp.eq.s32.totalorder %s33, 1
      %p233 = por %p231, %p232
      %p235 = scmp.ne.s32.totalorder %s218, %s234
      %p236 = scmp.eq.s32.totalorder %s33, 0
      %p237 = por %p235, %p236
      %p238 = scmp.le.s32.totalorder 1, %s27
      %p239 = scmp.lt.s32.totalorder %s27, 3
      %p240 = pnand %p238, %p239
      %p241 = pneg %p240
      // Predicated region
      $region9: #{tpu_custom_call.1} parent=5 // pred_check
        _
      $region10: #{tpu_custom_call.1} parent=5 // pred_check_branch
        %243 = sbr.rel (%p240) target = $region12
      $region11: #{tpu_custom_call.1} parent=5 // pred_region
        %s244 = ssub.s32 %s27, 1
        // Predicated region
        $region13: #{tpu_custom_call.1} parent=11 // pred_check
          %p245 = pneg %p48
        $region14: #{tpu_custom_call.1} parent=11 // pred_check_branch
          %247 = sbr.rel (%p245) target = $region16
        $region15: #{tpu_custom_call.1} parent=11 // pred_region
          %249 = vsyncadd [#allocation3], 0
          %s251 = sshll.u32 %s0, 4
          %s252 = int_to_ptr.hbm [resolvable:$true] %s251
          %s253 = sshll.u32 [#allocation2], 4
          %s254 = int_to_ptr.vmem [resolvable:$true] %s253
          %256 = dma.hbm_to_vmem [thread:$0]  %s252, 64, %s254, [#allocation3]
        $region16: #{tpu_custom_call.1} parent=11 // pred_fallthru
          _
      $region12: #{tpu_custom_call.1} parent=5 // pred_fallthru
        _
      %p257 = scmp.lt.s32.totalorder %s27, 2
      // Predicated region
      $region17: #{tpu_custom_call.1} parent=5 // pred_check
        %p258 = pneg %p257
      $region18: #{tpu_custom_call.1} parent=5 // pred_check_branch
        %260 = sbr.rel (%p258) target = $region20
      $region19: #{tpu_custom_call.1} parent=5 // pred_region
        // Predicated region
        $region21: #{tpu_custom_call.1} parent=19 // pred_check
          %p261 = pneg %p68
        $region22: #{tpu_custom_call.1} parent=19 // pred_check_branch
          %263 = sbr.rel (%p261) target = $region24
        $region23: #{tpu_custom_call.1} parent=19 // pred_region
          %s264 = sand.u32 %s27, 1
          %s265 = scalar_lea.sflag [#allocation6], %s264
          %s266 = sand.u32 %s58, 1
          %s267 = smul.addr %s266, 1024
          %s268 = scalar_lea.vmem [#allocation5], %s267
          %s269 = smul.u32 64, %s27
          %271 = vsyncadd %s265, 0
          %s272 = smul.addr %s269, 2
          %s273 = smul.addr %s272, 8
          %s274 = scalar_lea.hbm %s1, %s273
          %s275 = sshll.u32 %s274, 4
          %s276 = int_to_ptr.hbm [resolvable:$true] %s275
          %s277 = sshll.u32 %s268, 4
          %s278 = int_to_ptr.vmem [resolvable:$true] %s277
          %283 = dma.hbm_to_vmem [thread:$0]  %s276, 16384, %s278, %s265, 256, 256, 16
        $region24: #{tpu_custom_call.1} parent=19 // pred_fallthru
          _
        // Predicated region
        $region25: #{tpu_custom_call.1} parent=19 // pred_check
          %p284 = pneg %p94
        $region26: #{tpu_custom_call.1} parent=19 // pred_check_branch
          %286 = sbr.rel (%p284) target = $region28
        $region27: #{tpu_custom_call.1} parent=19 // pred_region
          %s287 = sand.u32 %s27, 1
          %s288 = scalar_lea.sflag [#allocation6], %s287
          %s289 = sand.u32 %s84, 1
          %s290 = smul.addr %s289, 4
          %s291 = scalar_lea.vmem [#allocation7], %s290
          %s292 = smul.u32 4, %s27
          %294 = vsyncadd %s288, 0
          %s295 = scalar_lea.hbm %s2, %s292
          %s297 = sshll.u32 %s295, 4
          %s298 = int_to_ptr.hbm [resolvable:$true] %s297
          %s299 = sshll.u32 %s291, 4
          %s300 = int_to_ptr.vmem [resolvable:$true] %s299
          %302 = dma.hbm_to_vmem [thread:$0]  %s298, 64, %s300, %s288
        $region28: #{tpu_custom_call.1} parent=19 // pred_fallthru
          _
        // Predicated region
        $region29: #{tpu_custom_call.1} parent=19 // pred_check
          %p303 = pneg %p120
        $region30: #{tpu_custom_call.1} parent=19 // pred_check_branch
          %305 = sbr.rel (%p303) target = $region32
        $region31: #{tpu_custom_call.1} parent=19 // pred_region
          %p306 = scmp.lt.s32.totalorder %s27, 1
          %s307 = scalar_select %p306, %s27, 1
          %s308 = scalar_lea.vmem %s3, %s307
        $region32: #{tpu_custom_call.1} parent=19 // pred_fallthru
          _
      $region20: #{tpu_custom_call.1} parent=5 // pred_fallthru
        _
      %p309 = scmp.le.s32.totalorder 1, %s27
      %p310 = scmp.lt.s32.totalorder %s27, 3
      %p311 = pnand %p309, %p310
      %p312 = pneg %p311
      // Predicated region
      $region33: #{tpu_custom_call.1} parent=5 // pred_check
        _
      $region34: #{tpu_custom_call.1} parent=5 // pred_check_branch
        %314 = sbr.rel (%p311) target = $region36
      $region35: #{tpu_custom_call.1} parent=5 // pred_region
        %s315 = ssub.s32 %s27, 1
        // Predicated region
        $region37: #{tpu_custom_call.1} parent=35 // pred_check
          %p316 = pneg %p48
        $region38: #{tpu_custom_call.1} parent=35 // pred_check_branch
          %318 = sbr.rel (%p316) target = $region40
        $region39: #{tpu_custom_call.1} parent=35 // pred_region
          %320 = dma.done [#allocation3], 64
        $region40: #{tpu_custom_call.1} parent=35 // pred_fallthru
          _
        %s321 = sand.u32 %s32, 1
        %s322 = scalar_lea.sflag [#allocation6], %s321
        %s323 = sand.u32 %s61, 1
        %s324 = smul.addr %s323, 1024
        %s325 = scalar_lea.vmem [#allocation5], %s324
        // Predicated region
        $region41: #{tpu_custom_call.1} parent=35 // pred_check
          %p326 = pneg %p74
        $region42: #{tpu_custom_call.1} parent=35 // pred_check_branch
          %328 = sbr.rel (%p326) target = $region44
        $region43: #{tpu_custom_call.1} parent=35 // pred_region
          %330 = dma.done %s322, 16384
        $region44: #{tpu_custom_call.1} parent=35 // pred_fallthru
          _
        %s331 = sand.u32 %s32, 1
        %s332 = scalar_lea.sflag [#allocation6], %s331
        %s333 = sand.u32 %s87, 1
        %s334 = smul.addr %s333, 4
        %s335 = scalar_lea.vmem [#allocation7], %s334
        // Predicated region
        $region45: #{tpu_custom_call.1} parent=35 // pred_check
          %p336 = pneg %p100
        $region46: #{tpu_custom_call.1} parent=35 // pred_check_branch
          %338 = sbr.rel (%p336) target = $region48
        $region47: #{tpu_custom_call.1} parent=35 // pred_region
          %340 = dma.done %s332, 64
        $region48: #{tpu_custom_call.1} parent=35 // pred_fallthru
          _
        %p341 = pneg %p48
        %p342 = pneg %p45
        %s343 = sand.u32 %s32, 1
        %s344 = scalar_lea.sflag [#allocation6], %s343
        %s345 = sand.u32 %s61, 1
        %s346 = smul.addr %s345, 1024
        %s347 = scalar_lea.vmem [#allocation5], %s346
        %p348 = pneg %p74
        %p349 = pneg %p71
        %s350 = sand.u32 %s32, 1
        %s351 = scalar_lea.sflag [#allocation6], %s350
        %s352 = sand.u32 %s87, 1
        %s353 = smul.addr %s352, 4
        %s354 = scalar_lea.vmem [#allocation7], %s353
        %p355 = pneg %p100
        %p356 = pneg %p97
        %p357 = scmp.lt.s32.totalorder %s32, 1
        %s358 = scalar_select %p357, %s32, 1
        %s359 = scalar_lea.vmem %s3, %s358
        %p360 = pneg %p126
        %p361 = pneg %p123
        %p362 = pneg %p152
        %p363 = pneg %p149
        %s364 = sand.u32 %s139, 1
        %s365 = scalar_lea.sflag [#allocation4], %s364
        %s366 = sand.u32 %s139, 1
        %s367 = smul.addr %s366, 2
        %s368 = scalar_lea.vmem [#allocation8], %s367
        %p369 = pneg %p178
        %p370 = pneg %p175
        %s371 = sand.u32 %s32, 1
        %s372 = scalar_lea.sflag [#allocation10], %s371
        %s373 = sand.u32 %s165, 1
        %s374 = smul.addr %s373, 2
        %s375 = scalar_lea.vmem [#allocation9], %s374
        %p376 = pneg %p204
        %p377 = pneg %p201
        %s378 = sand.u32 %s32, 1
        %s379 = scalar_lea.sflag [#allocation10], %s378
        %s380 = sand.u32 %s191, 1
        %s381 = smul.addr %s380, 2
        %s382 = scalar_lea.vmem [#allocation11], %s381
        %p383 = pneg %p230
        %p384 = pneg %p227
        %s385 = sand.u32 %s217, 1
        %s386 = scalar_lea.sflag [#allocation13], %s385
        %s387 = sand.u32 %s217, 1
        %s388 = smul.addr %s387, 2
        %s389 = scalar_lea.vmem [#allocation12], %s388
        %s390 = smul.u32 64, %s32
        %s391 = smul.u32 4, %s32
        %p392 = scmp.lt.s32.totalorder %s32, 1
        %s393 = scalar_select %p392, %s32, 1
        %s394 = scalar_lea.vmem %s3, %s393
        %v395 = vld [vmem:[#allocation2] sm:$0xf]
        %v396 = vld [vmem:[%s325] sm:$0xff]
        %v397 = vld [vmem:[%s325 + $0x8] sm:$0xff]
        %v398 = vld [vmem:[%s325 + $0x10] sm:$0xff]
        %v399 = vld [vmem:[%s325 + $0x18] sm:$0xff]
        %v400 = vld [vmem:[%s325 + $0x20] sm:$0xff]
        %v401 = vld [vmem:[%s325 + $0x28] sm:$0xff]
        %v402 = vld [vmem:[%s325 + $0x30] sm:$0xff]
        %v403 = vld [vmem:[%s325 + $0x38] sm:$0xff]
        %v404 = vld [vmem:[%s325 + $0x40] sm:$0xff]
        %v405 = vld [vmem:[%s325 + $0x48] sm:$0xff]
        %v406 = vld [vmem:[%s325 + $0x50] sm:$0xff]
        %v407 = vld [vmem:[%s325 + $0x58] sm:$0xff]
        %v408 = vld [vmem:[%s325 + $0x60] sm:$0xff]
        %v409 = vld [vmem:[%s325 + $0x68] sm:$0xff]
        %v410 = vld [vmem:[%s325 + $0x70] sm:$0xff]
        %v411 = vld [vmem:[%s325 + $0x78] sm:$0xff]
        %v412 = vld [vmem:[%s325 + $0x80] sm:$0xff]
        %v413 = vld [vmem:[%s325 + $0x88] sm:$0xff]
        %v414 = vld [vmem:[%s325 + $0x90] sm:$0xff]
        %v415 = vld [vmem:[%s325 + $0x98] sm:$0xff]
        %v416 = vld [vmem:[%s325 + $0xa0] sm:$0xff]
        %v417 = vld [vmem:[%s325 + $0xa8] sm:$0xff]
        %v418 = vld [vmem:[%s325 + $0xb0] sm:$0xff]
        %v419 = vld [vmem:[%s325 + $0xb8] sm:$0xff]
        %v420 = vld [vmem:[%s325 + $0xc0] sm:$0xff]
        %v421 = vld [vmem:[%s325 + $0xc8] sm:$0xff]
        %v422 = vld [vmem:[%s325 + $0xd0] sm:$0xff]
        %v423 = vld [vmem:[%s325 + $0xd8] sm:$0xff]
        %v424 = vld [vmem:[%s325 + $0xe0] sm:$0xff]
        %v425 = vld [vmem:[%s325 + $0xe8] sm:$0xff]
        %v426 = vld [vmem:[%s325 + $0xf0] sm:$0xff]
        %v427 = vld [vmem:[%s325 + $0xf8] sm:$0xff]
        %v428 = vld [vmem:[%s325 + $0x100] sm:$0xff]
        %v429 = vld [vmem:[%s325 + $0x108] sm:$0xff]
        %v430 = vld [vmem:[%s325 + $0x110] sm:$0xff]
        %v431 = vld [vmem:[%s325 + $0x118] sm:$0xff]
        %v432 = vld [vmem:[%s325 + $0x120] sm:$0xff]
        %v433 = vld [vmem:[%s325 + $0x128] sm:$0xff]
        %v434 = vld [vmem:[%s325 + $0x130] sm:$0xff]
        %v435 = vld [vmem:[%s325 + $0x138] sm:$0xff]
        %v436 = vld [vmem:[%s325 + $0x140] sm:$0xff]
        %v437 = vld [vmem:[%s325 + $0x148] sm:$0xff]
        %v438 = vld [vmem:[%s325 + $0x150] sm:$0xff]
        %v439 = vld [vmem:[%s325 + $0x158] sm:$0xff]
        %v440 = vld [vmem:[%s325 + $0x160] sm:$0xff]
        %v441 = vld [vmem:[%s325 + $0x168] sm:$0xff]
        %v442 = vld [vmem:[%s325 + $0x170] sm:$0xff]
        %v443 = vld [vmem:[%s325 + $0x178] sm:$0xff]
        %v444 = vld [vmem:[%s325 + $0x180] sm:$0xff]
        %v445 = vld [vmem:[%s325 + $0x188] sm:$0xff]
        %v446 = vld [vmem:[%s325 + $0x190] sm:$0xff]
        %v447 = vld [vmem:[%s325 + $0x198] sm:$0xff]
        %v448 = vld [vmem:[%s325 + $0x1a0] sm:$0xff]
        %v449 = vld [vmem:[%s325 + $0x1a8] sm:$0xff]
        %v450 = vld [vmem:[%s325 + $0x1b0] sm:$0xff]
        %v451 = vld [vmem:[%s325 + $0x1b8] sm:$0xff]
        %v452 = vld [vmem:[%s325 + $0x1c0] sm:$0xff]
        %v453 = vld [vmem:[%s325 + $0x1c8] sm:$0xff]
        %v454 = vld [vmem:[%s325 + $0x1d0] sm:$0xff]
        %v455 = vld [vmem:[%s325 + $0x1d8] sm:$0xff]
        %v456 = vld [vmem:[%s325 + $0x1e0] sm:$0xff]
        %v457 = vld [vmem:[%s325 + $0x1e8] sm:$0xff]
        %v458 = vld [vmem:[%s325 + $0x1f0] sm:$0xff]
        %v459 = vld [vmem:[%s325 + $0x1f8] sm:$0xff]
        %v460 = vld [vmem:[%s325 + $0x200] sm:$0xff]
        %v461 = vld [vmem:[%s325 + $0x208] sm:$0xff]
        %v462 = vld [vmem:[%s325 + $0x210] sm:$0xff]
        %v463 = vld [vmem:[%s325 + $0x218] sm:$0xff]
        %v464 = vld [vmem:[%s325 + $0x220] sm:$0xff]
        %v465 = vld [vmem:[%s325 + $0x228] sm:$0xff]
        %v466 = vld [vmem:[%s325 + $0x230] sm:$0xff]
        %v467 = vld [vmem:[%s325 + $0x238] sm:$0xff]
        %v468 = vld [vmem:[%s325 + $0x240] sm:$0xff]
        %v469 = vld [vmem:[%s325 + $0x248] sm:$0xff]
        %v470 = vld [vmem:[%s325 + $0x250] sm:$0xff]
        %v471 = vld [vmem:[%s325 + $0x258] sm:$0xff]
        %v472 = vld [vmem:[%s325 + $0x260] sm:$0xff]
        %v473 = vld [vmem:[%s325 + $0x268] sm:$0xff]
        %v474 = vld [vmem:[%s325 + $0x270] sm:$0xff]
        %v475 = vld [vmem:[%s325 + $0x278] sm:$0xff]
        %v476 = vld [vmem:[%s325 + $0x280] sm:$0xff]
        %v477 = vld [vmem:[%s325 + $0x288] sm:$0xff]
        %v478 = vld [vmem:[%s325 + $0x290] sm:$0xff]
        %v479 = vld [vmem:[%s325 + $0x298] sm:$0xff]
        %v480 = vld [vmem:[%s325 + $0x2a0] sm:$0xff]
        %v481 = vld [vmem:[%s325 + $0x2a8] sm:$0xff]
        %v482 = vld [vmem:[%s325 + $0x2b0] sm:$0xff]
        %v483 = vld [vmem:[%s325 + $0x2b8] sm:$0xff]
        %v484 = vld [vmem:[%s325 + $0x2c0] sm:$0xff]
        %v485 = vld [vmem:[%s325 + $0x2c8] sm:$0xff]
        %v486 = vld [vmem:[%s325 + $0x2d0] sm:$0xff]
        %v487 = vld [vmem:[%s325 + $0x2d8] sm:$0xff]
        %v488 = vld [vmem:[%s325 + $0x2e0] sm:$0xff]
        %v489 = vld [vmem:[%s325 + $0x2e8] sm:$0xff]
        %v490 = vld [vmem:[%s325 + $0x2f0] sm:$0xff]
        %v491 = vld [vmem:[%s325 + $0x2f8] sm:$0xff]
        %v492 = vld [vmem:[%s325 + $0x300] sm:$0xff]
        %v493 = vld [vmem:[%s325 + $0x308] sm:$0xff]
        %v494 = vld [vmem:[%s325 + $0x310] sm:$0xff]
        %v495 = vld [vmem:[%s325 + $0x318] sm:$0xff]
        %v496 = vld [vmem:[%s325 + $0x320] sm:$0xff]
        %v497 = vld [vmem:[%s325 + $0x328] sm:$0xff]
        %v498 = vld [vmem:[%s325 + $0x330] sm:$0xff]
        %v499 = vld [vmem:[%s325 + $0x338] sm:$0xff]
        %v500 = vld [vmem:[%s325 + $0x340] sm:$0xff]
        %v501 = vld [vmem:[%s325 + $0x348] sm:$0xff]
        %v502 = vld [vmem:[%s325 + $0x350] sm:$0xff]
        %v503 = vld [vmem:[%s325 + $0x358] sm:$0xff]
        %v504 = vld [vmem:[%s325 + $0x360] sm:$0xff]
        %v505 = vld [vmem:[%s325 + $0x368] sm:$0xff]
        %v506 = vld [vmem:[%s325 + $0x370] sm:$0xff]
        %v507 = vld [vmem:[%s325 + $0x378] sm:$0xff]
        %v508 = vld [vmem:[%s325 + $0x380] sm:$0xff]
        %v509 = vld [vmem:[%s325 + $0x388] sm:$0xff]
        %v510 = vld [vmem:[%s325 + $0x390] sm:$0xff]
        %v511 = vld [vmem:[%s325 + $0x398] sm:$0xff]
        %v512 = vld [vmem:[%s325 + $0x3a0] sm:$0xff]
        %v513 = vld [vmem:[%s325 + $0x3a8] sm:$0xff]
        %v514 = vld [vmem:[%s325 + $0x3b0] sm:$0xff]
        %v515 = vld [vmem:[%s325 + $0x3b8] sm:$0xff]
        %v516 = vld [vmem:[%s325 + $0x3c0] sm:$0xff]
        %v517 = vld [vmem:[%s325 + $0x3c8] sm:$0xff]
        %v518 = vld [vmem:[%s325 + $0x3d0] sm:$0xff]
        %v519 = vld [vmem:[%s325 + $0x3d8] sm:$0xff]
        %v520 = vld [vmem:[%s325 + $0x3e0] sm:$0xff]
        %v521 = vld [vmem:[%s325 + $0x3e8] sm:$0xff]
        %v522 = vld [vmem:[%s325 + $0x3f0] sm:$0xff]
        %v523 = vld [vmem:[%s325 + $0x3f8] sm:$0xff]
        %v524 = vld [vmem:[%s335] sm:$0xf]
        %v526 = vperm.slane %v524, 0
        %v527 = vperm.slane %v524, 1
        %v528 = vperm.slane %v524, 2
        %v529 = vperm.slane %v524, 3
        %535 = vst [vmem:[#allocation1] ss:$4 sm:$0xff] %v395
        %v536 = vld.sshfl [vmem:[#allocation1] sm:$0xff pattern:$0x73625140]
        %v537 = vld.sshfl [vmem:[#allocation1 + $0x8] sm:$0xff pattern:$0x73625140]
        %540 = vmatpush.xpose.msra.mxu0 %v426
        %541 = vmatpush.xpose.msra.mxu0 %v424
        %542 = vmatpush.xpose.msra.mxu0 %v422
        %543 = vmatpush.xpose.msra.mxu0 %v420
        %544 = vmatpush.xpose.msra.mxu0 %v418
        %545 = vmatpush.xpose.msra.mxu0 %v416
        %546 = vmatpush.xpose.msra.mxu0 %v414
        %547 = vmatpush.xpose.msra.mxu0 %v412
        %548 = vmatpush.xpose.msra.mxu0 %v410
        %549 = vmatpush.xpose.msra.mxu0 %v408
        %550 = vmatpush.xpose.msra.mxu0 %v406
        %551 = vmatpush.xpose.msra.mxu0 %v404
        %552 = vmatpush.xpose.msra.mxu0 %v402
        %553 = vmatpush.xpose.msra.mxu0 %v400
        %554 = vmatpush.xpose.msra.mxu0 %v398
        %555 = vmatpush.xpose.msra.mxu0 %v396
        %556 = vmatmul.f32.gmra.mxu0 %v536
        %v557 = vpop.f32.mrf.mxu0
        %v558 = vadd.f32 %v526, %v557
        %559 = vdwg.mxu0
        %560 = vmatpush.xpose.msra.mxu0 %v427
        %561 = vmatpush.xpose.msra.mxu0 %v425
        %562 = vmatpush.xpose.msra.mxu0 %v423
        %563 = vmatpush.xpose.msra.mxu0 %v421
        %564 = vmatpush.xpose.msra.mxu0 %v419
        %565 = vmatpush.xpose.msra.mxu0 %v417
        %566 = vmatpush.xpose.msra.mxu0 %v415
        %567 = vmatpush.xpose.msra.mxu0 %v413
        %568 = vmatpush.xpose.msra.mxu0 %v411
        %569 = vmatpush.xpose.msra.mxu0 %v409
        %570 = vmatpush.xpose.msra.mxu0 %v407
        %571 = vmatpush.xpose.msra.mxu0 %v405
        %572 = vmatpush.xpose.msra.mxu0 %v403
        %573 = vmatpush.xpose.msra.mxu0 %v401
        %574 = vmatpush.xpose.msra.mxu0 %v399
        %575 = vmatpush.xpose.msra.mxu0 %v397
        %576 = vmatmul.f32.gmra.mxu0 %v537
        %v577 = vpop.f32.mrf.mxu0
        %v578 = vadd.f32 %v558, %v577
        %579 = vdwg.mxu0
        %580 = vmatpush.xpose.msra.mxu0 %v458
        %581 = vmatpush.xpose.msra.mxu0 %v456
        %582 = vmatpush.xpose.msra.mxu0 %v454
        %583 = vmatpush.xpose.msra.mxu0 %v452
        %584 = vmatpush.xpose.msra.mxu0 %v450
        %585 = vmatpush.xpose.msra.mxu0 %v448
        %586 = vmatpush.xpose.msra.mxu0 %v446
        %587 = vmatpush.xpose.msra.mxu0 %v444
        %588 = vmatpush.xpose.msra.mxu0 %v442
        %589 = vmatpush.xpose.msra.mxu0 %v440
        %590 = vmatpush.xpose.msra.mxu0 %v438
        %591 = vmatpush.xpose.msra.mxu0 %v436
        %592 = vmatpush.xpose.msra.mxu0 %v434
        %593 = vmatpush.xpose.msra.mxu0 %v432
        %594 = vmatpush.xpose.msra.mxu0 %v430
        %595 = vmatpush.xpose.msra.mxu0 %v428
        %596 = vmatmul.f32.gmra.mxu0 %v536
        %v597 = vpop.f32.mrf.mxu0
        %v598 = vadd.f32 %v527, %v597
        %599 = vdwg.mxu0
        %600 = vmatpush.xpose.msra.mxu0 %v459
        %601 = vmatpush.xpose.msra.mxu0 %v457
        %602 = vmatpush.xpose.msra.mxu0 %v455
        %603 = vmatpush.xpose.msra.mxu0 %v453
        %604 = vmatpush.xpose.msra.mxu0 %v451
        %605 = vmatpush.xpose.msra.mxu0 %v449
        %606 = vmatpush.xpose.msra.mxu0 %v447
        %607 = vmatpush.xpose.msra.mxu0 %v445
        %608 = vmatpush.xpose.msra.mxu0 %v443
        %609 = vmatpush.xpose.msra.mxu0 %v441
        %610 = vmatpush.xpose.msra.mxu0 %v439
        %611 = vmatpush.xpose.msra.mxu0 %v437
        %612 = vmatpush.xpose.msra.mxu0 %v435
        %613 = vmatpush.xpose.msra.mxu0 %v433
        %614 = vmatpush.xpose.msra.mxu0 %v431
        %615 = vmatpush.xpose.msra.mxu0 %v429
        %616 = vmatmul.f32.gmra.mxu0 %v537
        %v617 = vpop.f32.mrf.mxu0
        %v618 = vadd.f32 %v598, %v617
        %619 = vdwg.mxu0
        %620 = vmatpush.xpose.msra.mxu0 %v490
        %621 = vmatpush.xpose.msra.mxu0 %v488
        %622 = vmatpush.xpose.msra.mxu0 %v486
        %623 = vmatpush.xpose.msra.mxu0 %v484
        %624 = vmatpush.xpose.msra.mxu0 %v482
        %625 = vmatpush.xpose.msra.mxu0 %v480
        %626 = vmatpush.xpose.msra.mxu0 %v478
        %627 = vmatpush.xpose.msra.mxu0 %v476
        %628 = vmatpush.xpose.msra.mxu0 %v474
        %629 = vmatpush.xpose.msra.mxu0 %v472
        %630 = vmatpush.xpose.msra.mxu0 %v470
        %631 = vmatpush.xpose.msra.mxu0 %v468
        %632 = vmatpush.xpose.msra.mxu0 %v466
        %633 = vmatpush.xpose.msra.mxu0 %v464
        %634 = vmatpush.xpose.msra.mxu0 %v462
        %635 = vmatpush.xpose.msra.mxu0 %v460
        %636 = vmatmul.f32.gmra.mxu0 %v536
        %v637 = vpop.f32.mrf.mxu0
        %v638 = vadd.f32 %v528, %v637
        %639 = vdwg.mxu0
        %640 = vmatpush.xpose.msra.mxu0 %v491
        %641 = vmatpush.xpose.msra.mxu0 %v489
        %642 = vmatpush.xpose.msra.mxu0 %v487
        %643 = vmatpush.xpose.msra.mxu0 %v485
        %644 = vmatpush.xpose.msra.mxu0 %v483
        %645 = vmatpush.xpose.msra.mxu0 %v481
        %646 = vmatpush.xpose.msra.mxu0 %v479
        %647 = vmatpush.xpose.msra.mxu0 %v477
        %648 = vmatpush.xpose.msra.mxu0 %v475
        %649 = vmatpush.xpose.msra.mxu0 %v473
        %650 = vmatpush.xpose.msra.mxu0 %v471
        %651 = vmatpush.xpose.msra.mxu0 %v469
        %652 = vmatpush.xpose.msra.mxu0 %v467
        %653 = vmatpush.xpose.msra.mxu0 %v465
        %654 = vmatpush.xpose.msra.mxu0 %v463
        %655 = vmatpush.xpose.msra.mxu0 %v461
        %656 = vmatmul.f32.gmra.mxu0 %v537
        %v657 = vpop.f32.mrf.mxu0
        %v658 = vadd.f32 %v638, %v657
        %659 = vdwg.mxu0
        %660 = vmatpush.xpose.msra.mxu0 %v522
        %661 = vmatpush.xpose.msra.mxu0 %v520
        %662 = vmatpush.xpose.msra.mxu0 %v518
        %663 = vmatpush.xpose.msra.mxu0 %v516
        %664 = vmatpush.xpose.msra.mxu0 %v514
        %665 = vmatpush.xpose.msra.mxu0 %v512
        %666 = vmatpush.xpose.msra.mxu0 %v510
        %667 = vmatpush.xpose.msra.mxu0 %v508
        %668 = vmatpush.xpose.msra.mxu0 %v506
        %669 = vmatpush.xpose.msra.mxu0 %v504
        %670 = vmatpush.xpose.msra.mxu0 %v502
        %671 = vmatpush.xpose.msra.mxu0 %v500
        %672 = vmatpush.xpose.msra.mxu0 %v498
        %673 = vmatpush.xpose.msra.mxu0 %v496
        %674 = vmatpush.xpose.msra.mxu0 %v494
        %675 = vmatpush.xpose.msra.mxu0 %v492
        %676 = vmatmul.f32.gmra.mxu0 %v536
        %v677 = vpop.f32.mrf.mxu0
        %v678 = vadd.f32 %v529, %v677
        %679 = vdwg.mxu0
        %680 = vmatpush.xpose.msra.mxu0 %v523
        %681 = vmatpush.xpose.msra.mxu0 %v521
        %682 = vmatpush.xpose.msra.mxu0 %v519
        %683 = vmatpush.xpose.msra.mxu0 %v517
        %684 = vmatpush.xpose.msra.mxu0 %v515
        %685 = vmatpush.xpose.msra.mxu0 %v513
        %686 = vmatpush.xpose.msra.mxu0 %v511
        %687 = vmatpush.xpose.msra.mxu0 %v509
        %688 = vmatpush.xpose.msra.mxu0 %v507
        %689 = vmatpush.xpose.msra.mxu0 %v505
        %690 = vmatpush.xpose.msra.mxu0 %v503
        %691 = vmatpush.xpose.msra.mxu0 %v501
        %692 = vmatpush.xpose.msra.mxu0 %v499
        %693 = vmatpush.xpose.msra.mxu0 %v497
        %694 = vmatpush.xpose.msra.mxu0 %v495
        %695 = vmatpush.xpose.msra.mxu0 %v493
        %696 = vmatmul.f32.gmra.mxu0 %v537
        %v697 = vpop.f32.mrf.mxu0
        %v698 = vadd.f32 %v678, %v697
        %699 = vdwg.mxu0
        %v700 = vld [vmem:[%s394] sm:$0x1]
        %v701 = vadd.f32 %v578, 1.0
        %v703 = vperm.slane %v700, 0
        %v705 = vmul.f32 %v703, %v701
        %706 = vst [vmem:[%s368] sm:$0x3] %v705
        %707 = vst [vmem:[%s375] sm:$0x3] %v618
        %708 = vst [vmem:[%s382] sm:$0x3] %v658
        %709 = vst [vmem:[%s389] sm:$0x3] %v698
        %s710 = sand.u32 %s139, 1
        %s711 = scalar_lea.sflag [#allocation4], %s710
        %s712 = sand.u32 %s139, 1
        %s713 = smul.addr %s712, 2
        %s714 = scalar_lea.vmem [#allocation8], %s713
        %s715 = sand.u32 %s32, 1
        %s716 = scalar_lea.sflag [#allocation10], %s715
        %s717 = sand.u32 %s165, 1
        %s718 = smul.addr %s717, 2
        %s719 = scalar_lea.vmem [#allocation9], %s718
        %s720 = sand.u32 %s32, 1
        %s721 = scalar_lea.sflag [#allocation10], %s720
        %s722 = sand.u32 %s191, 1
        %s723 = smul.addr %s722, 2
        %s724 = scalar_lea.vmem [#allocation11], %s723
        %s725 = sand.u32 %s217, 1
        %s726 = scalar_lea.sflag [#allocation13], %s725
        %s727 = sand.u32 %s217, 1
        %s728 = smul.addr %s727, 2
        %s729 = scalar_lea.vmem [#allocation12], %s728
        // Predicated region
        $region49: #{tpu_custom_call.1} parent=35 // pred_check
          %p730 = pneg %p149
        $region50: #{tpu_custom_call.1} parent=35 // pred_check_branch
          %732 = sbr.rel (%p730) target = $region52
        $region51: #{tpu_custom_call.1} parent=35 // pred_region
          %734 = vsyncadd %s711, 0
          %s735 = smul.addr %s32, 2
          %s736 = scalar_lea.hbm %s4, %s735
          %s738 = sshll.u32 %s714, 4
          %s739 = int_to_ptr.vmem [resolvable:$true] %s738
          %s740 = sshll.u32 %s736, 4
          %s741 = int_to_ptr.hbm [resolvable:$true] %s740
          %743 = dma.vmem_to_hbm [thread:$0]  %s739, 32, %s741, %s711
        $region52: #{tpu_custom_call.1} parent=35 // pred_fallthru
          _
        // Predicated region
        $region53: #{tpu_custom_call.1} parent=35 // pred_check
          %p744 = pneg %p175
        $region54: #{tpu_custom_call.1} parent=35 // pred_check_branch
          %746 = sbr.rel (%p744) target = $region56
        $region55: #{tpu_custom_call.1} parent=35 // pred_region
          %748 = vsyncadd %s716, 0
          %s749 = smul.addr %s32, 2
          %s750 = scalar_lea.hbm %s5, %s749
          %s752 = sshll.u32 %s719, 4
          %s753 = int_to_ptr.vmem [resolvable:$true] %s752
          %s754 = sshll.u32 %s750, 4
          %s755 = int_to_ptr.hbm [resolvable:$true] %s754
          %757 = dma.vmem_to_hbm [thread:$0]  %s753, 32, %s755, %s716
        $region56: #{tpu_custom_call.1} parent=35 // pred_fallthru
          _
        // Predicated region
        $region57: #{tpu_custom_call.1} parent=35 // pred_check
          %p758 = pneg %p201
        $region58: #{tpu_custom_call.1} parent=35 // pred_check_branch
          %760 = sbr.rel (%p758) target = $region60
        $region59: #{tpu_custom_call.1} parent=35 // pred_region
          %762 = vsyncadd %s721, 0
          %s763 = smul.addr %s32, 2
          %s764 = scalar_lea.hbm %s6, %s763
          %s766 = sshll.u32 %s724, 4
          %s767 = int_to_ptr.vmem [resolvable:$true] %s766
          %s768 = sshll.u32 %s764, 4
          %s769 = int_to_ptr.hbm [resolvable:$true] %s768
          %771 = dma.vmem_to_hbm [thread:$0]  %s767, 32, %s769, %s721
        $region60: #{tpu_custom_call.1} parent=35 // pred_fallthru
          _
        // Predicated region
        $region61: #{tpu_custom_call.1} parent=35 // pred_check
          %p772 = pneg %p227
        $region62: #{tpu_custom_call.1} parent=35 // pred_check_branch
          %774 = sbr.rel (%p772) target = $region64
        $region63: #{tpu_custom_call.1} parent=35 // pred_region
          %776 = vsyncadd %s726, 0
          %s777 = smul.addr %s32, 2
          %s778 = scalar_lea.hbm %s7, %s777
          %s780 = sshll.u32 %s729, 4
          %s781 = int_to_ptr.vmem [resolvable:$true] %s780
          %s782 = sshll.u32 %s778, 4
          %s783 = int_to_ptr.hbm [resolvable:$true] %s782
          %785 = dma.vmem_to_hbm [thread:$0]  %s781, 32, %s783, %s726
        $region64: #{tpu_custom_call.1} parent=35 // pred_fallthru
          _
      $region36: #{tpu_custom_call.1} parent=5 // pred_fallthru
        _
      %p786 = scmp.le.s32.totalorder 2, %s27
      // Predicated region
      $region65: #{tpu_custom_call.1} parent=5 // pred_check
        %p787 = pneg %p786
      $region66: #{tpu_custom_call.1} parent=5 // pred_check_branch
        %789 = sbr.rel (%p787) target = $region68
      $region67: #{tpu_custom_call.1} parent=5 // pred_region
        %s790 = ssub.s32 %s27, 2
        // Predicated region
        $region69: #{tpu_custom_call.1} parent=67 // pred_check
          %p791 = pneg %p155
        $region70: #{tpu_custom_call.1} parent=67 // pred_check_branch
          %793 = sbr.rel (%p791) target = $region72
        $region71: #{tpu_custom_call.1} parent=67 // pred_region
          %s794 = sand.u32 %s140, 1
          %s795 = scalar_lea.sflag [#allocation4], %s794
          %s796 = sand.u32 %s140, 1
          %s797 = smul.addr %s796, 2
          %s798 = scalar_lea.vmem [#allocation8], %s797
          %800 = dma.done %s795, 32
        $region72: #{tpu_custom_call.1} parent=67 // pred_fallthru
          _
        // Predicated region
        $region73: #{tpu_custom_call.1} parent=67 // pred_check
          %p801 = pneg %p181
        $region74: #{tpu_custom_call.1} parent=67 // pred_check_branch
          %803 = sbr.rel (%p801) target = $region76
        $region75: #{tpu_custom_call.1} parent=67 // pred_region
          %s804 = sand.u32 %s33, 1
          %s805 = scalar_lea.sflag [#allocation10], %s804
          %s806 = sand.u32 %s166, 1
          %s807 = smul.addr %s806, 2
          %s808 = scalar_lea.vmem [#allocation9], %s807
          %810 = dma.done %s805, 32
        $region76: #{tpu_custom_call.1} parent=67 // pred_fallthru
          _
        // Predicated region
        $region77: #{tpu_custom_call.1} parent=67 // pred_check
          %p811 = pneg %p207
        $region78: #{tpu_custom_call.1} parent=67 // pred_check_branch
          %813 = sbr.rel (%p811) target = $region80
        $region79: #{tpu_custom_call.1} parent=67 // pred_region
          %s814 = sand.u32 %s33, 1
          %s815 = scalar_lea.sflag [#allocation10], %s814
          %s816 = sand.u32 %s192, 1
          %s817 = smul.addr %s816, 2
          %s818 = scalar_lea.vmem [#allocation11], %s817
          %820 = dma.done %s815, 32
        $region80: #{tpu_custom_call.1} parent=67 // pred_fallthru
          _
        // Predicated region
        $region81: #{tpu_custom_call.1} parent=67 // pred_check
          %p821 = pneg %p233
        $region82: #{tpu_custom_call.1} parent=67 // pred_check_branch
          %823 = sbr.rel (%p821) target = $region84
        $region83: #{tpu_custom_call.1} parent=67 // pred_region
          %s824 = sand.u32 %s218, 1
          %s825 = scalar_lea.sflag [#allocation13], %s824
          %s826 = sand.u32 %s218, 1
          %s827 = smul.addr %s826, 2
          %s828 = scalar_lea.vmem [#allocation12], %s827
          %830 = dma.done %s825, 32
        $region84: #{tpu_custom_call.1} parent=67 // pred_fallthru
          _
      $region68: #{tpu_custom_call.1} parent=5 // pred_fallthru
        _
    $region6: #{tpu_custom_call.1} parent=1 // loop_footer
      %s31 = sadd.s32 1, %s27
    $region7: #{tpu_custom_call.1} parent=1 // loop_footer_branch
      %26 = sbr.rel target = $region3
    $region8: #{tpu_custom_call.1} parent=1 // loop_exit
      _
    %831 = vsyncpa [#allocation3], 1
    %s832 = scalar_lea.sflag [#allocation3], 1
    %833 = vsyncpa %s832, 1
    %834 = vsyncpa [#allocation6], 1
    %s835 = scalar_lea.sflag [#allocation6], 1
    %836 = vsyncpa %s835, 1
    %837 = vsyncpa [#allocation4], 1
    %s838 = scalar_lea.sflag [#allocation4], 1
    %839 = vsyncpa %s838, 1
    %840 = vsyncpa [#allocation10], 1
    %s841 = scalar_lea.sflag [#allocation10], 1
    %842 = vsyncpa %s841, 1
    %843 = vsyncpa [#allocation13], 1
    %s844 = scalar_lea.sflag [#allocation13], 1
    %845 = vsyncpa %s844, 1

</llo_original>
